<compile_context>
chip_gen: v5e
topology: v5e:2x2
jax: 0.10.0
libtpu: 0.0.40
codegen_flags: <defaults>
</compile_context>

<pallas_src>
import jax
import jax.numpy as jnp
from jax.experimental import pallas as pl
from jax.experimental.pallas import tpu as pltpu


def _col0_kernel(x_ref, o_ref):
    """x_ref: (tile_g, genes, f_blk) node features; o_ref: (tile_g, genes)."""
    # Extract feature 0 of every node of every graph in the tile.  The result
    # is lane-dense (genes on the lane axis) and is stored with unmasked vst.
    o_ref[...] = x_ref[...][:, :, 0]


def _choose_tile_g(num_graphs, genes, f_blk, itemsize, vmem_budget_bytes):
    """Largest graph tile whose (padded) double-buffered footprint fits the budget."""
    # Mosaic pads the last two dims of a VMEM buffer to multiples of (8, 128).
    genes_sub_pad = -(-genes // 8) * 8          # input: genes on sublanes
    f_lane_pad = -(-f_blk // 128) * 128         # input: features on lanes (padded)
    genes_lane_pad = -(-genes // 128) * 128     # output: genes on lanes
    per_graph = 2 * genes_sub_pad * f_lane_pad * itemsize   # double-buffered input
    per_graph += 2 * genes_lane_pad * itemsize              # double-buffered output
    tile = max(1, int(vmem_budget_bytes) // max(per_graph, 1))
    if tile >= num_graphs or num_graphs <= 8:
        return num_graphs                        # single full-extent block
    # Output block's second-to-last dim must be a multiple of 8 (or full extent).
    return max(8, (tile // 8) * 8)


def debug_model_forward(x, batch=None, *, num_graphs=None,
                        vmem_budget_bytes=8 << 20):
    """JAX/Pallas equivalent of debug_model.forward.

    Args:
      x:          (N, F) node-feature matrix (data.x), N = num_graphs * genes.
      batch:      optional (N,) graph-assignment vector (data.batch); only used
                  by the slow host-side fallback when num_graphs is None.
      num_graphs: static Python int (preferred; avoids a device->host sync).

    Returns:
      (num_graphs, N // num_graphs) array == x[:, 0].reshape(num_graphs, -1).
    """
    N, F = x.shape
    if num_graphs is None:
        if batch is None:
            raise ValueError("pass num_graphs (preferred) or batch")
        # Host-side fallback only; mirrors `len(data.batch.unique())` but
        # forces a sync, so prefer passing num_graphs statically.
        num_graphs = int(jax.device_get(jnp.unique(batch)).shape[0])
    num_graphs = int(num_graphs)
    if N % num_graphs != 0:
        raise ValueError("N must be divisible by num_graphs (reshape requires it)")
    genes = N // num_graphs

    # Free row-major view: (graph, gene, feature).  No data movement.
    x3 = x.reshape(num_graphs, genes, F)

    # Wide-feature case: DMA only the first 128-lane slab (contains feature 0).
    f_blk = F if F < 128 else 128

    tile_g = _choose_tile_g(num_graphs, genes, f_blk,
                            jnp.dtype(x.dtype).itemsize, vmem_budget_bytes)
    grid = (pl.cdiv(num_graphs, tile_g),)

    # TODO(synk): for very large genes-per-graph, additionally tile the gene
    # axis (2-D grid) to keep the in-register block small.
    return pl.pallas_call(
        _col0_kernel,
        out_shape=jax.ShapeDtypeStruct((num_graphs, genes), x.dtype),
        grid=grid,
        in_specs=[pl.BlockSpec((tile_g, genes, f_blk), lambda i: (i, 0, 0))],
        out_specs=pl.BlockSpec((tile_g, genes), lambda i: (i, 0)),
        compiler_params=pltpu.CompilerParams(
            dimension_semantics=("parallel",)),
    )(x3)


if __name__ == "__main__":
    key = jax.random.PRNGKey(0)

    # Small shapes consistent with the module's forward:
    #   2 graphs in the batch, 16 "genes" (nodes) per graph, 4 node features.
    num_graphs, genes, num_features = 2, 16, 4
    N = num_graphs * genes
    kx, k2 = jax.random.split(key)
    x = jax.random.normal(kx, (N, num_features), dtype=jnp.float32)      # data.x
    batch = jnp.repeat(jnp.arange(num_graphs, dtype=jnp.int32), genes)   # data.batch

    fwd = jax.jit(debug_model_forward, static_argnames=("num_graphs",))
    out = jax.block_until_ready(fwd(x, batch, num_graphs=num_graphs))

    ref = x[:, 0].reshape((num_graphs, -1))
    assert out.shape == (num_graphs, genes), out.shape
    assert bool(jnp.allclose(out, ref)), "mismatch vs reference"

    # Second check: exercise a multi-step, parallel, tiled grid (small budget
    # forces tile_g=8 over 32 graphs -> grid of 4 steps).
    G2, genes2, F2 = 32, 16, 4
    x2 = jax.random.normal(k2, (G2 * genes2, F2), dtype=jnp.float32)
    out2 = jax.block_until_ready(
        debug_model_forward(x2, num_graphs=G2, vmem_budget_bytes=64 * 1024))
    assert bool(jnp.allclose(out2, x2[:, 0].reshape((G2, -1)))), "tiled mismatch"

    print("KERNEL_OK")
</pallas_src>

<mosaic_0001>
module attributes {stable_mosaic.version = 11 : i64} {
  func.func @_col0_kernel(%arg0: i32, %arg1: memref<2x16x4xf32, #tpu.memory_space<vmem>>, %arg2: memref<2x16xf32, #tpu.memory_space<vmem>>) attributes {dimension_semantics = [#tpu.dimension_semantics<parallel>], iteration_bounds = array<i64: 1>, scalar_prefetch = 0 : i64, scratch_operands = 0 : i64, tpu.core_type = #tpu.core_type<tc>, window_params = [{transform_indices = @transform_0, window_bounds = array<i64: 2, 16, 4>}, {transform_indices = @transform_1, window_bounds = array<i64: 2, 16>}]} {
    %c0 = arith.constant 0 : index
    %c0_0 = arith.constant 0 : index
    %c0_1 = arith.constant 0 : index
    %0 = vector.load %arg1[%c0, %c0_0, %c0_1] : memref<2x16x4xf32, #tpu.memory_space<vmem>>, vector<2x16x4xf32>
    %1 = vector.extract_strided_slice %0 {offsets = [0, 0, 0], sizes = [2, 16, 1], strides = [1, 1, 1]} : vector<2x16x4xf32> to vector<2x16x1xf32>
    %2 = vector.shape_cast %1 : vector<2x16x1xf32> to vector<2x16xf32>
    %c0_2 = arith.constant 0 : index
    %c0_3 = arith.constant 0 : index
    %3 = vector.load %arg2[%c0_2, %c0_3] : memref<2x16xf32, #tpu.memory_space<vmem>>, vector<2x16xf32>
    tpu.vector_store %arg2[%c0_2, %c0_3], %2 {strides = array<i32>} : memref<2x16xf32, #tpu.memory_space<vmem>>, vector<2x16xf32>,
    return
  }
  func.func @transform_0(%arg0: i32) -> (i32, i32, i32) {
    %c0_i32 = arith.constant 0 : i32
    %c0_i32_0 = arith.constant 0 : i32
    %c0_i32_1 = arith.constant 0 : i32
    return %arg0, %c0_i32, %c0_i32_0 : i32, i32, i32
  }
  func.func @transform_1(%arg0: i32) -> (i32, i32) {
    %c0_i32 = arith.constant 0 : i32
    %c0_i32_0 = arith.constant 0 : i32
    return %arg0, %c0_i32 : i32, i32
  }
}

</mosaic_0001>

<llo_original>
// kernel: debug_model_forward.1
$region0: #{debug_model_forward.1}
  #allocation0 [shape = 'u32[]', space=smem, size = 0x4, offset = 0x4, fixed_abs, tag = 'smem constant byte address 0x4 - core index']
  #allocation1 [shape = 'u32[72,128]{1,0:T(1,128)}', space=vmem, size = 0x9000, scoped, tag = 'internal scratch']
  %s0 = inlined_call_operand.vmem [shape: f32[2,16,4], index: 0, kind: input, shape index: {}]
  %s1 = inlined_call_operand.hbm [shape: f32[2,16], index: 1, kind: output, shape index: {}]
  %s2 = sld [smem:[#allocation0]]
  $region14: #{debug_model_forward.1} parent=0
    _
  %s4 = ssub.s32 1, %s2
  %s5 = scalar_select 0, %s4, %s2
  $region1: #{debug_model_forward.1} parent=0
    #allocation2 [shape = 'u8[1024]{0}', space=vmem, size = 0x400, scoped, tag = 'output window, operand 0, single buffered']
    #allocation3 [shape = 's32[1]{0}', space=sflag, size = 0x4, scoped, tag = 'scoped memory for debug_model_forward.1']
    %6 = vsyncpa [#allocation3], 0
    // Predicated region
    $region2: #{debug_model_forward.1} parent=1 // pred_check
      _
    $region3: #{debug_model_forward.1} parent=1 // pred_check_branch
      %8 = sbr.rel (0) target = $region5
    $region4: #{debug_model_forward.1} parent=1 // pred_region
      _
    $region5: #{debug_model_forward.1} parent=1 // pred_fallthru
      _
    %v9 = vld [vmem:[%s0] sm:$0xff]
    %v10 = vld [vmem:[%s0 + $0x8] sm:$0xff]
    %v11 = vld [vmem:[%s0 + $0x10] sm:$0xff]
    %v12 = vld [vmem:[%s0 + $0x18] sm:$0xff]
    %17 = vset.pattern.permute.xlu0 0
    %18 = vperm.xlu0 %17, %v9
    %v19 = vpop.permute.xlu0 %18
    %20 = vset.pattern.permute.xlu0 0
    %21 = vperm.xlu0 %20, %v10
    %v22 = vpop.permute.xlu0 %21
    %23 = vset.pattern.permute.xlu0 0
    %24 = vperm.xlu0 %23, %v11
    %v25 = vpop.permute.xlu0 %24
    %26 = vset.pattern.permute.xlu0 0
    %27 = vperm.xlu0 %26, %v12
    %v28 = vpop.permute.xlu0 %27
    %v29 = vlaneseq
    %v30 = vand.u32 %v29, 127
    %v31 = vperm.slane %v19, %v30
    %v32 = vadd.s32 %v30, 4294967288
    %v33 = vperm.slane %v22, %v32
    %vm34 = vcmask 130112
    %v35 = vsel %vm34, %v33, %v31
    %v36 = vperm.slane %v25, %v30
    %v37 = vperm.slane %v28, %v32
    %v38 = vsel %vm34, %v37, %v36
    %vm39 = vcmask 1041409
    %v40 = vsel %vm39, %v38, %v35
    %vm42 = vcmask 123904
    %43 = vst.msk [vmem:[#allocation2] sm:$0x3] %vm42, %v40
    // Predicated region
    $region6: #{debug_model_forward.1} parent=1 // pred_check
      _
    $region7: #{debug_model_forward.1} parent=1 // pred_check_branch
      %45 = sbr.rel (0) target = $region9
    $region8: #{debug_model_forward.1} parent=1 // pred_region
      %47 = vsyncadd [#allocation3], 0
      %s49 = sshll.u32 [#allocation2], 4
      %s50 = int_to_ptr.vmem [resolvable:$true] %s49
      %s51 = sshll.u32 %s1, 4
      %s52 = int_to_ptr.hbm [resolvable:$true] %s51
      %54 = dma.vmem_to_hbm [thread:$0]  %s50, 32, %s52, [#allocation3]
    $region9: #{debug_model_forward.1} parent=1 // pred_fallthru
      _
    // Predicated region
    $region10: #{debug_model_forward.1} parent=1 // pred_check
      _
    $region11: #{debug_model_forward.1} parent=1 // pred_check_branch
      %56 = sbr.rel (0) target = $region13
    $region12: #{debug_model_forward.1} parent=1 // pred_region
      %58 = dma.done [#allocation3], 32
    $region13: #{debug_model_forward.1} parent=1 // pred_fallthru
      _
    %59 = vsyncpa [#allocation3], 1

</llo_original>
